<compile_context>
chip_gen: v5e
topology: v5e:2x2
jax: 0.10.0
libtpu: 0.0.40
codegen_flags: <defaults>
</compile_context>

<pallas_src>
import functools
import math

import jax
import jax.numpy as jnp
from jax.experimental import pallas as pl
from jax.experimental.pallas import tpu as pltpu

LANE = 128
ROW_TILE = 2048  # rows per grid step -> 2048*128*4B = 1 MiB f32 per block


def _beta_mish_kernel(x_ref, o_ref, *, beta, pow2b):
    x = x_ref[...].astype(jnp.float32)
    if pow2b is not None:
        # tanh(beta * softplus(x)) = 1 - 2 / ((1 + e^x)^(2*beta) + 1)
        # (exact rewrite; pow2b = 2*beta is a small positive integer, so the
        #  power is plain VPU multiplies -> only 1 exp + 1 divide on the EUP).
        u = 1.0 + jnp.exp(x)          # overflow -> +inf is benign: tanh -> 1
        up = u
        for _ in range(pow2b - 1):
            up = up * u
        t = 1.0 - 2.0 / (up + 1.0)
    else:
        # generic beta: stable softplus, then tanh
        sp = jnp.maximum(x, 0.0) + jnp.log1p(jnp.exp(-jnp.abs(x)))
        t = jnp.tanh(beta * sp)
    o_ref[...] = (x * t).astype(o_ref.dtype)


def beta_mish(x, beta=1.5):
    orig_shape = x.shape
    orig_dtype = x.dtype
    n = math.prod(orig_shape)

    flat = x.reshape(-1)
    pad = (-n) % LANE
    if pad:  # only for lane-unaligned sizes (rare for NCHW activations)
        flat = jnp.pad(flat, (0, pad))
    rows = (n + pad) // LANE
    x2d = flat.reshape(rows, LANE)

    # Full-array block for small inputs, 2048-row (8-aligned) tiles otherwise;
    # the partial last block is handled by Pallas OOB masking.
    row_tile = ROW_TILE if rows > ROW_TILE else rows
    grid = (pl.cdiv(rows, row_tile),)

    # Fast path when 2*beta is a small positive integer (default beta=1.5 -> 3).
    two_beta = 2.0 * float(beta)
    r2b = int(round(two_beta))
    pow2b = r2b if (abs(two_beta - r2b) < 1e-12 and 1 <= r2b <= 8) else None

    out2d = pl.pallas_call(
        functools.partial(_beta_mish_kernel, beta=float(beta), pow2b=pow2b),
        out_shape=jax.ShapeDtypeStruct((rows, LANE), orig_dtype),
        grid=grid,
        in_specs=[pl.BlockSpec((row_tile, LANE), lambda i: (i, 0))],
        out_specs=pl.BlockSpec((row_tile, LANE), lambda i: (i, 0)),
        compiler_params=pltpu.CompilerParams(
            dimension_semantics=("parallel",)
        ),
    )(x2d)

    out = out2d.reshape(-1)
    if pad:
        out = out[:n]
    return out.reshape(orig_shape)


def beta_mish_ref(x, beta=1.5):
    xf = x.astype(jnp.float32)
    sp = jnp.maximum(xf, 0.0) + jnp.log1p(jnp.exp(-jnp.abs(xf)))
    return (xf * jnp.tanh(beta * sp)).astype(x.dtype)


if __name__ == "__main__":
    key = jax.random.PRNGKey(0)

    # main test: shapes consistent with the module (N, C, H, W)
    x = jax.random.normal(key, (2, 4, 16, 16), dtype=jnp.float32)
    out = jax.block_until_ready(beta_mish(x, beta=1.5))
    ref = beta_mish_ref(x, beta=1.5)
    assert out.shape == x.shape and out.dtype == x.dtype
    assert jnp.allclose(out, ref, atol=1e-5, rtol=1e-5)

    # wide-range check (|x| up to 100) for the reduced-transcendental path
    x_wide = jnp.linspace(-100.0, 100.0, 8 * 128, dtype=jnp.float32).reshape(8, 128)
    out_w = jax.block_until_ready(beta_mish(x_wide, beta=1.5))
    ref_w = beta_mish_ref(x_wide, beta=1.5)
    assert bool(jnp.all(jnp.isfinite(out_w)))
    assert jnp.allclose(out_w, ref_w, atol=1e-4, rtol=1e-4)

    # lane-unaligned size exercises the pad/slice fallback path
    x_odd = jax.random.normal(key, (3, 5, 7), dtype=jnp.float32)
    out_o = jax.block_until_ready(beta_mish(x_odd, beta=1.5))
    assert jnp.allclose(out_o, beta_mish_ref(x_odd, beta=1.5), atol=1e-5, rtol=1e-5)

    # generic-beta (non half-integer) fallback path
    out_g = jax.block_until_ready(beta_mish(x, beta=1.3))
    assert jnp.allclose(out_g, beta_mish_ref(x, beta=1.3), atol=1e-5, rtol=1e-5)

    print("KERNEL_OK")
</pallas_src>

<mosaic_0001>
module attributes {stable_mosaic.version = 11 : i64} {
  func.func @_beta_mish_kernel(%arg0: i32, %arg1: memref<16x128xf32, #tpu.memory_space<vmem>>, %arg2: memref<16x128xf32, #tpu.memory_space<vmem>>) attributes {dimension_semantics = [#tpu.dimension_semantics<parallel>], iteration_bounds = array<i64: 1>, scalar_prefetch = 0 : i64, scratch_operands = 0 : i64, tpu.core_type = #tpu.core_type<tc>, window_params = [{transform_indices = @transform_0, window_bounds = array<i64: 16, 128>}, {transform_indices = @transform_1, window_bounds = array<i64: 16, 128>}]} {
    %c0 = arith.constant 0 : index
    %c0_0 = arith.constant 0 : index
    %0 = vector.load %arg1[%c0, %c0_0] : memref<16x128xf32, #tpu.memory_space<vmem>>, vector<16x128xf32>
    %1 = math.exp %0 : vector<16x128xf32>
    %cst = arith.constant 1.000000e+00 : f32
    %2 = vector.broadcast %cst : f32 to vector<16x128xf32>
    %3 = arith.addf %2, %1 : vector<16x128xf32>
    %4 = arith.mulf %3, %3 : vector<16x128xf32>
    %5 = arith.mulf %4, %3 : vector<16x128xf32>
    %cst_1 = arith.constant 1.000000e+00 : f32
    %6 = vector.broadcast %cst_1 : f32 to vector<16x128xf32>
    %7 = arith.addf %5, %6 : vector<16x128xf32>
    %cst_2 = arith.constant 2.000000e+00 : f32
    %8 = vector.broadcast %cst_2 : f32 to vector<16x128xf32>
    %9 = arith.divf %8, %7 : vector<16x128xf32>
    %cst_3 = arith.constant 1.000000e+00 : f32
    %10 = vector.broadcast %cst_3 : f32 to vector<16x128xf32>
    %11 = arith.subf %10, %9 : vector<16x128xf32>
    %12 = arith.mulf %0, %11 : vector<16x128xf32>
    %c0_4 = arith.constant 0 : index
    %c0_5 = arith.constant 0 : index
    %13 = vector.load %arg2[%c0_4, %c0_5] : memref<16x128xf32, #tpu.memory_space<vmem>>, vector<16x128xf32>
    tpu.vector_store %arg2[%c0_4, %c0_5], %12 {strides = array<i32>} : memref<16x128xf32, #tpu.memory_space<vmem>>, vector<16x128xf32>,
    return
  }
  func.func @transform_0(%arg0: i32) -> (i32, i32) {
    %c0_i32 = arith.constant 0 : i32
    %c0_i32_0 = arith.constant 0 : i32
    return %arg0, %c0_i32 : i32, i32
  }
  func.func @transform_1(%arg0: i32) -> (i32, i32) {
    %c0_i32 = arith.constant 0 : i32
    %c0_i32_0 = arith.constant 0 : i32
    return %arg0, %c0_i32 : i32, i32
  }
}

</mosaic_0001>

<llo_original>
// kernel: tpu_custom_call.1
$region0: #{tpu_custom_call.1}
  #allocation0 [shape = 'u32[]', space=smem, size = 0x4, offset = 0x4, fixed_abs, tag = 'smem constant byte address 0x4 - core index']
  #allocation1 [shape = 'u32[72,128]{1,0:T(1,128)}', space=vmem, size = 0x9000, scoped, tag = 'internal scratch']
  %s0 = inlined_call_operand.hbm [shape: f32[16,128], index: 0, kind: input, shape index: {}]
  %s1 = inlined_call_operand.hbm [shape: f32[16,128], index: 1, kind: output, shape index: {}]
  %s2 = sld [smem:[#allocation0]]
  $region18: #{tpu_custom_call.1} parent=0
    _
  %s4 = ssub.s32 1, %s2
  %s5 = scalar_select 0, %s4, %s2
  $region1: #{tpu_custom_call.1} parent=0
    #allocation2 [shape = 'u8[8192]{0}', space=vmem, size = 0x2000, scoped, tag = 'input window, operand 0, single buffered']
    #allocation3 [shape = 's32[1]{0}', space=sflag, size = 0x4, scoped, tag = 'scoped memory for tpu_custom_call.1']
    #allocation4 [shape = 's32[1]{0}', space=sflag, size = 0x4, scoped, tag = 'scoped memory for tpu_custom_call.1']
    #allocation5 [shape = 'u8[8192]{0}', space=vmem, size = 0x2000, scoped, tag = 'output window, operand 0, single buffered']
    %6 = vsyncpa [#allocation3], 0
    %7 = vsyncpa [#allocation4], 0
    // Predicated region
    $region2: #{tpu_custom_call.1} parent=1 // pred_check
      _
    $region3: #{tpu_custom_call.1} parent=1 // pred_check_branch
      %9 = sbr.rel (0) target = $region5
    $region4: #{tpu_custom_call.1} parent=1 // pred_region
      %11 = vsyncadd [#allocation3], 0
      %s12 = sshll.u32 %s0, 4
      %s13 = int_to_ptr.hbm [resolvable:$true] %s12
      %s14 = sshll.u32 [#allocation2], 4
      %s15 = int_to_ptr.vmem [resolvable:$true] %s14
      %20 = dma.hbm_to_vmem [thread:$0]  %s13, 256, %s15, [#allocation3], 128, 128, 8
    $region5: #{tpu_custom_call.1} parent=1 // pred_fallthru
      _
    // Predicated region
    $region6: #{tpu_custom_call.1} parent=1 // pred_check
      _
    $region7: #{tpu_custom_call.1} parent=1 // pred_check_branch
      %22 = sbr.rel (0) target = $region9
    $region8: #{tpu_custom_call.1} parent=1 // pred_region
      %24 = dma.done [#allocation3], 256
    $region9: #{tpu_custom_call.1} parent=1 // pred_fallthru
      _
    %v25 = vld [vmem:[#allocation2] sm:$0xff]
    %v26 = vld [vmem:[#allocation2 + $0x8] sm:$0xff]
    %v27 = vmul.f32 %v25, 1.442695
    %v28 = vpow.pop %v27
    %v29 = vmul.f32 %v26, 1.442695
    %v30 = vpow.pop %v29
    %v31 = vadd.f32 %v28, 1.0
    %v32 = vadd.f32 %v30, 1.0
    %v33 = vmul.f32 %v31, %v31
    %v34 = vmul.f32 %v32, %v32
    %v35 = vmul.f32 %v33, %v31
    %v36 = vmul.f32 %v34, %v32
    %v37 = vadd.f32 %v35, 1.0
    %v38 = vadd.f32 %v36, 1.0
    %v39 = vrcp.pop %v37
    %v40 = vmul.f32 %v37, %v39
    %v41 = vsub.f32 1.0, %v40
    %v42 = vmul.f32 %v39, %v41
    %v43 = vadd.f32 %v39, %v42
    %vm44 = vweird.f32 %v37
    %vm45 = vweird.f32 %v39
    %vm46 = vmor %vm44, %vm45
    %v47 = vsel %vm46, %v39, %v43
    %v48 = vand.u32 2147483647, %v37
    %vm49 = vcmp.eq.f32.partialorder %v48, 8.507059e+37
    %v50 = vand.u32 %v37, 2147483648
    %v51 = vor.u32 1.1754944e-38, %v50
    %v52 = vsel %vm49, %v51, %v47
    %v53 = vmul.f32 2.0, %v52
    %v54 = vrcp.pop %v38
    %v55 = vmul.f32 %v38, %v54
    %v56 = vsub.f32 1.0, %v55
    %v57 = vmul.f32 %v54, %v56
    %v58 = vadd.f32 %v54, %v57
    %vm59 = vweird.f32 %v38
    %vm60 = vweird.f32 %v54
    %vm61 = vmor %vm59, %vm60
    %v62 = vsel %vm61, %v54, %v58
    %v63 = vand.u32 2147483647, %v38
    %vm64 = vcmp.eq.f32.partialorder %v63, 8.507059e+37
    %v65 = vand.u32 %v38, 2147483648
    %v66 = vor.u32 1.1754944e-38, %v65
    %v67 = vsel %vm64, %v66, %v62
    %v68 = vmul.f32 2.0, %v67
    %v69 = vsub.f32 1.0, %v53
    %v70 = vsub.f32 1.0, %v68
    %v71 = vmul.f32 %v25, %v69
    %v72 = vmul.f32 %v26, %v70
    %73 = vst [vmem:[#allocation5] sm:$0xff] %v71
    %74 = vst [vmem:[#allocation5 + $0x8] sm:$0xff] %v72
    // Predicated region
    $region10: #{tpu_custom_call.1} parent=1 // pred_check
      _
    $region11: #{tpu_custom_call.1} parent=1 // pred_check_branch
      %76 = sbr.rel (0) target = $region13
    $region12: #{tpu_custom_call.1} parent=1 // pred_region
      %78 = vsyncadd [#allocation4], 0
      %s79 = sshll.u32 [#allocation5], 4
      %s80 = int_to_ptr.vmem [resolvable:$true] %s79
      %s81 = sshll.u32 %s1, 4
      %s82 = int_to_ptr.hbm [resolvable:$true] %s81
      %87 = dma.vmem_to_hbm [thread:$0]  %s80, 256, %s82, [#allocation4], 128, 128, 8
    $region13: #{tpu_custom_call.1} parent=1 // pred_fallthru
      _
    // Predicated region
    $region14: #{tpu_custom_call.1} parent=1 // pred_check
      _
    $region15: #{tpu_custom_call.1} parent=1 // pred_check_branch
      %89 = sbr.rel (0) target = $region17
    $region16: #{tpu_custom_call.1} parent=1 // pred_region
      %91 = dma.done [#allocation4], 256
    $region17: #{tpu_custom_call.1} parent=1 // pred_fallthru
      _
    %92 = vsyncpa [#allocation3], 1
    %93 = vsyncpa [#allocation4], 1

</llo_original>
